<compile_context>
chip_gen: v5e
topology: v5e:2x2
jax: 0.10.0
libtpu: 0.0.40
codegen_flags: <defaults>
</compile_context>

<pallas_src>
import functools

import jax
import jax.numpy as jnp
from jax.experimental import pallas as pl
from jax.experimental.pallas import tpu as pltpu


_VMEM_BUDGET = 24 << 20  # conservative: fits every generation's default-ish scoped VMEM


def _round_up(v, m):
    return ((v + m - 1) // m) * m


def _pick_row_tile(ho, wo, row_bytes, budget):
    """Largest output-row tile: full Ho if it fits, else the largest divisor
    of Ho whose row block is lane-dense (TH*Wo % 128 == 0) and fits."""
    if ho * row_bytes <= budget:
        return ho
    for th in range(ho - 1, 0, -1):
        if ho % th == 0 and (th * wo) % 128 == 0 and th * row_bytes <= budget:
            return th
    return ho  # TODO(synk): halo-tile H instead of falling back to full height.


def _pick_batch_tile(n, per_image_bytes, budget):
    """Largest divisor of N whose batch block fits the VMEM budget."""
    for nb in range(n, 0, -1):
        if n % nb == 0 and nb * per_image_bytes <= budget:
            return nb
    return 1


def _scconv_k1_kernel(x_ref, w_ref, shift_ref, o_ref, *, stride, dilation,
                      kh_size, kw_size, th, wo, nb, n_hblk):
    """One (batch-block, output-row-block) tile per grid step.

    x_ref:     (NB, V, Cin, L)   column-shifted views (stride==1: V=KW,
                                 L=Hp*Wo) or per-tap views (stride>1:
                                 V=KH*KW, L=Ho*Wo); rows flattened onto lanes.
    w_ref:     (KH*KW, Cout, Cin)  BN-scale-folded conv weights (mxu dtype).
    shift_ref: (Cout, 1)           BN shift (beta - mean*scale), f32.
    o_ref:     (NB, Cout, TH*Wo)   lane-dense output row block.
    """
    cout = w_ref.shape[1]
    p = th * wo

    if n_hblk > 1:
        # Dynamic but 128-aligned lane base for the row block.
        # TODO(synk): validate the dynamic lane-offset path (n_hblk > 1) on
        # hardware; the demo shapes always collapse to n_hblk == 1 (static).
        base = pl.multiple_of(pl.program_id(1) * (th * wo), 128)
    else:
        base = 0  # single row block per image -> fully static slices

    for b in range(nb):
        acc = jnp.zeros((cout, p), dtype=jnp.float32)
        for kh in range(kh_size):
            for kw in range(kw_size):
                tap = kh * kw_size + kw
                if stride == 1:
                    view, lane0 = kw, base + (kh * dilation) * wo
                else:
                    view, lane0 = tap, base
                # Lane-dense (Cin, TH*Wo) slice -> straight into the MXU.
                xw = x_ref[b, view, :, pl.ds(lane0, p)]
                acc = acc + jnp.dot(w_ref[tap], xw,
                                    preferred_element_type=jnp.float32)
        # BN shift (scale already folded into the weights); f32 on the VPU.
        o_ref[b] = (acc + shift_ref[...]).astype(o_ref.dtype)


def scconv_block2_forward(x_nchw, w_oihw, gamma, beta, running_mean,
                          running_var, *, stride=1, padding=1, dilation=1,
                          groups=1, eps=1e-5, mxu_dtype=jnp.bfloat16):
    """Pallas implementation of SCConvBlock2.forward (NCHW in / NCHW out).

    BatchNorm is applied in eval mode (running stats folded into the conv
    weights plus a per-channel shift), i.e. inference semantics.  MXU operands
    are bf16 by default (native on v5e/v6e/v7x, f32 accumulation kept);
    mxu_dtype=jnp.float32 gives the exact path.
    """
    assert groups == 1, "only groups=1 implemented"
    # TODO(synk): grouped conv (groups > 1) needs per-group weight/channel slicing.

    N, Cin, H, W = x_nchw.shape
    Cout, Cin_w, KH, KW = w_oihw.shape
    assert Cin_w == Cin

    Ho = (H + 2 * padding - dilation * (KH - 1) - 1) // stride + 1
    Wo = (W + 2 * padding - dilation * (KW - 1) - 1) // stride + 1
    Hp, Wp = H + 2 * padding, W + 2 * padding
    K = KH * KW * Cin

    # ---- wrapper glue: pad + BN folding + column-shifted lane-flat views ----
    x_pad = jnp.pad(x_nchw, ((0, 0), (0, 0),
                             (padding, padding), (padding, padding)))

    scale = (gamma / jnp.sqrt(running_var + eps)).astype(jnp.float32)
    shift = (beta.astype(jnp.float32)
             - running_mean.astype(jnp.float32) * scale).reshape(Cout, 1)
    w_taps = w_oihw.astype(jnp.float32) * scale[:, None, None, None]
    w_taps = jnp.transpose(w_taps, (2, 3, 0, 1)).reshape(KH * KW, Cout, Cin)
    w_taps = w_taps.astype(mxu_dtype)

    if stride == 1:
        # KW column-shifted copies with rows flattened onto the lane axis, so
        # each (kh, kw) tap of an output row block is one contiguous lane slice.
        views = [x_pad[:, :, :, kw * dilation: kw * dilation + Wo]
                 for kw in range(KW)]
        x_prep = jnp.stack(views, axis=1).reshape(N, KW, Cin, Hp * Wo)
        n_views, L = KW, Hp * Wo
    else:
        # stride > 1: per-tap strided views (KH*KW copies).
        # TODO(synk): move this compaction into an in-kernel staging copy for
        # production stride>1 shapes to avoid KH*KW-fold HBM replication.
        taps = []
        for kh in range(KH):
            for kw in range(KW):
                taps.append(x_pad[
                    :, :,
                    kh * dilation: kh * dilation + (Ho - 1) * stride + 1: stride,
                    kw * dilation: kw * dilation + (Wo - 1) * stride + 1: stride])
        x_prep = jnp.stack(taps, axis=1).reshape(N, KH * KW, Cin, Ho * Wo)
        n_views, L = KH * KW, Ho * Wo
    x_prep = x_prep.astype(mxu_dtype)

    # ---- tiling: largest lane-dense row tile, largest batch block that fits ----
    in_isz = jnp.dtype(mxu_dtype).itemsize
    out_isz = jnp.dtype(x_nchw.dtype).itemsize

    row_bytes = 2 * _round_up(Cout, 8) * Wo * out_isz
    th = _pick_row_tile(Ho, Wo, row_bytes, 8 << 20)
    n_hblk = Ho // th
    P = th * Wo

    # Note: the (Cin, L) input block pads L to the next multiple of 128 lanes;
    # harmless at small W, ~14% waste at W=112 (documented, not worth chasing).
    per_image = (n_views * _round_up(Cin, 8) * _round_up(L, 128) * in_isz
                 + _round_up(Cout, 8) * _round_up(P, 128) * out_isz)
    nb = _pick_batch_tile(N, 2 * per_image, _VMEM_BUDGET)  # x2: double-buffered
    n_nblk = N // nb

    est_vmem = 2 * nb * per_image + (1 << 20)
    compiler_kwargs = dict(dimension_semantics=("parallel", "parallel"))
    if est_vmem > (16 << 20):
        compiler_kwargs["vmem_limit_bytes"] = int(min(est_vmem + (8 << 20),
                                                      56 << 20))

    kernel = functools.partial(
        _scconv_k1_kernel, stride=stride, dilation=dilation, kh_size=KH,
        kw_size=KW, th=th, wo=Wo, nb=nb, n_hblk=n_hblk)

    flops = 2 * N * Ho * Wo * K * Cout
    bytes_accessed = int(N * n_views * Cin * L * in_isz
                         + KH * KW * Cout * Cin * in_isz + Cout * 4
                         + N * Cout * Ho * Wo * out_isz)

    out_flat = pl.pallas_call(
        kernel,
        out_shape=jax.ShapeDtypeStruct((N, Cout, Ho * Wo), x_nchw.dtype),
        grid_spec=pltpu.PrefetchScalarGridSpec(
            num_scalar_prefetch=0,
            grid=(n_nblk, n_hblk),
            in_specs=[
                # Full (column-shifted) images per batch block; the block index
                # depends only on the batch axis, so each image block is DMA'd
                # once and kept resident across the row-block axis.
                pl.BlockSpec((nb, n_views, Cin, L), lambda i, j: (i, 0, 0, 0)),
                pl.BlockSpec((KH * KW, Cout, Cin), lambda i, j: (0, 0, 0)),
                pl.BlockSpec((Cout, 1), lambda i, j: (0, 0)),
            ],
            out_specs=pl.BlockSpec((nb, Cout, P), lambda i, j: (i, 0, j)),
        ),
        compiler_params=pltpu.CompilerParams(**compiler_kwargs),
        cost_estimate=pl.CostEstimate(flops=flops, transcendentals=0,
                                      bytes_accessed=bytes_accessed),
    )(x_prep, w_taps, shift)

    # Lane-dense flat output -> NCHW needs only a reshape (no transpose).
    return out_flat.reshape(N, Cout, Ho, Wo)


def _reference_forward(x_nchw, w_oihw, gamma, beta, running_mean, running_var,
                       *, stride, padding, dilation, eps=1e-5):
    """Pure-JAX reference (lax conv + eval-mode BN) for correctness checks."""
    y = jax.lax.conv_general_dilated(
        x_nchw.astype(jnp.float32), w_oihw.astype(jnp.float32),
        window_strides=(stride, stride),
        padding=((padding, padding), (padding, padding)),
        rhs_dilation=(dilation, dilation),
        dimension_numbers=("NCHW", "OIHW", "NCHW"))
    scale = gamma / jnp.sqrt(running_var + eps)
    shift = beta - running_mean * scale
    return y * scale[None, :, None, None] + shift[None, :, None, None]


if __name__ == "__main__":
    # Module config: SCConvBlock2(inplanes=4, planes=8, stride=1, padding=1,
    #                             dilation=1, groups=1, pooling_r=4,
    #                             norm_layer=nn.BatchNorm2d)
    inplanes, planes = 4, 8
    N, H, W = 2, 16, 16

    key = jax.random.PRNGKey(0)
    k_x, k_w, k_g, k_b, k_m, k_v = jax.random.split(key, 6)

    x = jax.random.normal(k_x, (N, inplanes, H, W), dtype=jnp.float32)
    w = jax.random.normal(k_w, (planes, inplanes, 3, 3), dtype=jnp.float32) * 0.1
    gamma = 1.0 + 0.1 * jax.random.normal(k_g, (planes,), dtype=jnp.float32)
    beta = 0.1 * jax.random.normal(k_b, (planes,), dtype=jnp.float32)
    running_mean = 0.1 * jax.random.normal(k_m, (planes,), dtype=jnp.float32)
    running_var = jnp.abs(jax.random.normal(k_v, (planes,),
                                            dtype=jnp.float32)) + 0.5

    def check(stride, padding, dilation, mxu_dtype, tol):
        out = scconv_block2_forward(
            x, w, gamma, beta, running_mean, running_var, stride=stride,
            padding=padding, dilation=dilation, groups=1, mxu_dtype=mxu_dtype)
        out = jax.block_until_ready(out)
        ref = _reference_forward(x, w, gamma, beta, running_mean, running_var,
                                 stride=stride, padding=padding,
                                 dilation=dilation)
        assert out.shape == ref.shape, (out.shape, ref.shape)
        err = float(jnp.max(jnp.abs(out - ref)))
        assert err < tol, (stride, padding, dilation, str(mxu_dtype), err)

    # Module demo config (stride=1, padding=dilation=1): bf16 MXU operands
    # (the default), then the exact f32-operand path.
    check(1, 1, 1, jnp.bfloat16, 3e-2)
    check(1, 1, 1, jnp.float32, 1e-3)
    # Downsampling config (stride=2) and dilated config (padding=dilation=2),
    # previously untested code paths.
    check(2, 1, 1, jnp.float32, 1e-3)
    check(1, 2, 2, jnp.float32, 1e-3)

    print("KERNEL_OK")
</pallas_src>

<mosaic_0001>
module attributes {stable_mosaic.version = 11 : i64} {
  func.func @_scconv_k1_kernel(%arg0: i32, %arg1: i32, %arg2: memref<2x3x4x288xbf16, #tpu.memory_space<vmem>>, %arg3: memref<9x8x4xbf16, #tpu.memory_space<vmem>>, %arg4: memref<8x1xf32, #tpu.memory_space<vmem>>, %arg5: memref<2x8x256xf32, #tpu.memory_space<vmem>>) attributes {dimension_semantics = [#tpu.dimension_semantics<parallel>, #tpu.dimension_semantics<parallel>], iteration_bounds = array<i64: 1, 1>, scalar_prefetch = 0 : i64, scratch_operands = 0 : i64, tpu.core_type = #tpu.core_type<tc>, window_params = [{transform_indices = @transform_0, window_bounds = array<i64: 2, 3, 4, 288>}, {pipeline_mode = #tpu.pipeline_mode<synchronous>, transform_indices = @transform_1, window_bounds = array<i64: 9, 8, 4>}, {pipeline_mode = #tpu.pipeline_mode<synchronous>, transform_indices = @transform_2, window_bounds = array<i64: 8, 1>}, {transform_indices = @transform_3, window_bounds = array<i64: 2, 8, 256>}]} {
    %cst = arith.constant 0.000000e+00 : f32
    %0 = vector.broadcast %cst : f32 to vector<8x256xf32>
    %c0 = arith.constant 0 : index
    %c0_0 = arith.constant 0 : index
    %c0_1 = arith.constant 0 : index
    %c0_2 = arith.constant 0 : index
    %1 = vector.load %arg2[%c0, %c0_0, %c0_1, %c0_2] : memref<2x3x4x288xbf16, #tpu.memory_space<vmem>>, vector<1x1x4x256xbf16>
    %2 = vector.shape_cast %1 : vector<1x1x4x256xbf16> to vector<4x256xbf16>
    %c0_3 = arith.constant 0 : index
    %c0_4 = arith.constant 0 : index
    %c0_5 = arith.constant 0 : index
    %3 = vector.load %arg3[%c0_3, %c0_4, %c0_5] : memref<9x8x4xbf16, #tpu.memory_space<vmem>>, vector<1x8x4xbf16>
    %4 = vector.shape_cast %3 : vector<1x8x4xbf16> to vector<8x4xbf16>
    %cst_6 = arith.constant dense<0.000000e+00> : vector<8x256xf32>
    %5 = tpu.matmul %4, %2, %cst_6 {dimension_numbers = #tpu.dot_dimension_numbers<[1], [0], [0], [1], [0, 0, 1, 1], [], []>} : vector<8x4xbf16>, vector<4x256xbf16>, vector<8x256xf32> -> vector<8x256xf32>
    %6 = arith.addf %0, %5 : vector<8x256xf32>
    %c0_7 = arith.constant 0 : index
    %c1 = arith.constant 1 : index
    %c0_8 = arith.constant 0 : index
    %c0_9 = arith.constant 0 : index
    %7 = vector.load %arg2[%c0_7, %c1, %c0_8, %c0_9] : memref<2x3x4x288xbf16, #tpu.memory_space<vmem>>, vector<1x1x4x256xbf16>
    %8 = vector.shape_cast %7 : vector<1x1x4x256xbf16> to vector<4x256xbf16>
    %c1_10 = arith.constant 1 : index
    %c0_11 = arith.constant 0 : index
    %c0_12 = arith.constant 0 : index
    %9 = vector.load %arg3[%c1_10, %c0_11, %c0_12] : memref<9x8x4xbf16, #tpu.memory_space<vmem>>, vector<1x8x4xbf16>
    %10 = vector.shape_cast %9 : vector<1x8x4xbf16> to vector<8x4xbf16>
    %cst_13 = arith.constant dense<0.000000e+00> : vector<8x256xf32>
    %11 = tpu.matmul %10, %8, %cst_13 {dimension_numbers = #tpu.dot_dimension_numbers<[1], [0], [0], [1], [0, 0, 1, 1], [], []>} : vector<8x4xbf16>, vector<4x256xbf16>, vector<8x256xf32> -> vector<8x256xf32>
    %12 = arith.addf %6, %11 : vector<8x256xf32>
    %c0_14 = arith.constant 0 : index
    %c2 = arith.constant 2 : index
    %c0_15 = arith.constant 0 : index
    %c0_16 = arith.constant 0 : index
    %13 = vector.load %arg2[%c0_14, %c2, %c0_15, %c0_16] : memref<2x3x4x288xbf16, #tpu.memory_space<vmem>>, vector<1x1x4x256xbf16>
    %14 = vector.shape_cast %13 : vector<1x1x4x256xbf16> to vector<4x256xbf16>
    %c2_17 = arith.constant 2 : index
    %c0_18 = arith.constant 0 : index
    %c0_19 = arith.constant 0 : index
    %15 = vector.load %arg3[%c2_17, %c0_18, %c0_19] : memref<9x8x4xbf16, #tpu.memory_space<vmem>>, vector<1x8x4xbf16>
    %16 = vector.shape_cast %15 : vector<1x8x4xbf16> to vector<8x4xbf16>
    %cst_20 = arith.constant dense<0.000000e+00> : vector<8x256xf32>
    %17 = tpu.matmul %16, %14, %cst_20 {dimension_numbers = #tpu.dot_dimension_numbers<[1], [0], [0], [1], [0, 0, 1, 1], [], []>} : vector<8x4xbf16>, vector<4x256xbf16>, vector<8x256xf32> -> vector<8x256xf32>
    %18 = arith.addf %12, %17 : vector<8x256xf32>
    %c0_21 = arith.constant 0 : index
    %c0_22 = arith.constant 0 : index
    %c0_23 = arith.constant 0 : index
    %c16 = arith.constant 16 : index
    %19 = vector.load %arg2[%c0_21, %c0_22, %c0_23, %c16] : memref<2x3x4x288xbf16, #tpu.memory_space<vmem>>, vector<1x1x4x256xbf16>
    %20 = vector.shape_cast %19 : vector<1x1x4x256xbf16> to vector<4x256xbf16>
    %c3 = arith.constant 3 : index
    %c0_24 = arith.constant 0 : index
    %c0_25 = arith.constant 0 : index
    %21 = vector.load %arg3[%c3, %c0_24, %c0_25] : memref<9x8x4xbf16, #tpu.memory_space<vmem>>, vector<1x8x4xbf16>
    %22 = vector.shape_cast %21 : vector<1x8x4xbf16> to vector<8x4xbf16>
    %cst_26 = arith.constant dense<0.000000e+00> : vector<8x256xf32>
    %23 = tpu.matmul %22, %20, %cst_26 {dimension_numbers = #tpu.dot_dimension_numbers<[1], [0], [0], [1], [0, 0, 1, 1], [], []>} : vector<8x4xbf16>, vector<4x256xbf16>, vector<8x256xf32> -> vector<8x256xf32>
    %24 = arith.addf %18, %23 : vector<8x256xf32>
    %c0_27 = arith.constant 0 : index
    %c1_28 = arith.constant 1 : index
    %c0_29 = arith.constant 0 : index
    %c16_30 = arith.constant 16 : index
    %25 = vector.load %arg2[%c0_27, %c1_28, %c0_29, %c16_30] : memref<2x3x4x288xbf16, #tpu.memory_space<vmem>>, vector<1x1x4x256xbf16>
    %26 = vector.shape_cast %25 : vector<1x1x4x256xbf16> to vector<4x256xbf16>
    %c4 = arith.constant 4 : index
    %c0_31 = arith.constant 0 : index
    %c0_32 = arith.constant 0 : index
    %27 = vector.load %arg3[%c4, %c0_31, %c0_32] : memref<9x8x4xbf16, #tpu.memory_space<vmem>>, vector<1x8x4xbf16>
    %28 = vector.shape_cast %27 : vector<1x8x4xbf16> to vector<8x4xbf16>
    %cst_33 = arith.constant dense<0.000000e+00> : vector<8x256xf32>
    %29 = tpu.matmul %28, %26, %cst_33 {dimension_numbers = #tpu.dot_dimension_numbers<[1], [0], [0], [1], [0, 0, 1, 1], [], []>} : vector<8x4xbf16>, vector<4x256xbf16>, vector<8x256xf32> -> vector<8x256xf32>
    %30 = arith.addf %24, %29 : vector<8x256xf32>
    %c0_34 = arith.constant 0 : index
    %c2_35 = arith.constant 2 : index
    %c0_36 = arith.constant 0 : index
    %c16_37 = arith.constant 16 : index
    %31 = vector.load %arg2[%c0_34, %c2_35, %c0_36, %c16_37] : memref<2x3x4x288xbf16, #tpu.memory_space<vmem>>, vector<1x1x4x256xbf16>
    %32 = vector.shape_cast %31 : vector<1x1x4x256xbf16> to vector<4x256xbf16>
    %c5 = arith.constant 5 : index
    %c0_38 = arith.constant 0 : index
    %c0_39 = arith.constant 0 : index
    %33 = vector.load %arg3[%c5, %c0_38, %c0_39] : memref<9x8x4xbf16, #tpu.memory_space<vmem>>, vector<1x8x4xbf16>
    %34 = vector.shape_cast %33 : vector<1x8x4xbf16> to vector<8x4xbf16>
    %cst_40 = arith.constant dense<0.000000e+00> : vector<8x256xf32>
    %35 = tpu.matmul %34, %32, %cst_40 {dimension_numbers = #tpu.dot_dimension_numbers<[1], [0], [0], [1], [0, 0, 1, 1], [], []>} : vector<8x4xbf16>, vector<4x256xbf16>, vector<8x256xf32> -> vector<8x256xf32>
    %36 = arith.addf %30, %35 : vector<8x256xf32>
    %c0_41 = arith.constant 0 : index
    %c0_42 = arith.constant 0 : index
    %c0_43 = arith.constant 0 : index
    %c32 = arith.constant 32 : index
    %37 = vector.load %arg2[%c0_41, %c0_42, %c0_43, %c32] : memref<2x3x4x288xbf16, #tpu.memory_space<vmem>>, vector<1x1x4x256xbf16>
    %38 = vector.shape_cast %37 : vector<1x1x4x256xbf16> to vector<4x256xbf16>
    %c6 = arith.constant 6 : index
    %c0_44 = arith.constant 0 : index
    %c0_45 = arith.constant 0 : index
    %39 = vector.load %arg3[%c6, %c0_44, %c0_45] : memref<9x8x4xbf16, #tpu.memory_space<vmem>>, vector<1x8x4xbf16>
    %40 = vector.shape_cast %39 : vector<1x8x4xbf16> to vector<8x4xbf16>
    %cst_46 = arith.constant dense<0.000000e+00> : vector<8x256xf32>
    %41 = tpu.matmul %40, %38, %cst_46 {dimension_numbers = #tpu.dot_dimension_numbers<[1], [0], [0], [1], [0, 0, 1, 1], [], []>} : vector<8x4xbf16>, vector<4x256xbf16>, vector<8x256xf32> -> vector<8x256xf32>
    %42 = arith.addf %36, %41 : vector<8x256xf32>
    %c0_47 = arith.constant 0 : index
    %c1_48 = arith.constant 1 : index
    %c0_49 = arith.constant 0 : index
    %c32_50 = arith.constant 32 : index
    %43 = vector.load %arg2[%c0_47, %c1_48, %c0_49, %c32_50] : memref<2x3x4x288xbf16, #tpu.memory_space<vmem>>, vector<1x1x4x256xbf16>
    %44 = vector.shape_cast %43 : vector<1x1x4x256xbf16> to vector<4x256xbf16>
    %c7 = arith.constant 7 : index
    %c0_51 = arith.constant 0 : index
    %c0_52 = arith.constant 0 : index
    %45 = vector.load %arg3[%c7, %c0_51, %c0_52] : memref<9x8x4xbf16, #tpu.memory_space<vmem>>, vector<1x8x4xbf16>
    %46 = vector.shape_cast %45 : vector<1x8x4xbf16> to vector<8x4xbf16>
    %cst_53 = arith.constant dense<0.000000e+00> : vector<8x256xf32>
    %47 = tpu.matmul %46, %44, %cst_53 {dimension_numbers = #tpu.dot_dimension_numbers<[1], [0], [0], [1], [0, 0, 1, 1], [], []>} : vector<8x4xbf16>, vector<4x256xbf16>, vector<8x256xf32> -> vector<8x256xf32>
    %48 = arith.addf %42, %47 : vector<8x256xf32>
    %c0_54 = arith.constant 0 : index
    %c2_55 = arith.constant 2 : index
    %c0_56 = arith.constant 0 : index
    %c32_57 = arith.constant 32 : index
    %49 = vector.load %arg2[%c0_54, %c2_55, %c0_56, %c32_57] : memref<2x3x4x288xbf16, #tpu.memory_space<vmem>>, vector<1x1x4x256xbf16>
    %50 = vector.shape_cast %49 : vector<1x1x4x256xbf16> to vector<4x256xbf16>
    %c8 = arith.constant 8 : index
    %c0_58 = arith.constant 0 : index
    %c0_59 = arith.constant 0 : index
    %51 = vector.load %arg3[%c8, %c0_58, %c0_59] : memref<9x8x4xbf16, #tpu.memory_space<vmem>>, vector<1x8x4xbf16>
    %52 = vector.shape_cast %51 : vector<1x8x4xbf16> to vector<8x4xbf16>
    %cst_60 = arith.constant dense<0.000000e+00> : vector<8x256xf32>
    %53 = tpu.matmul %52, %50, %cst_60 {dimension_numbers = #tpu.dot_dimension_numbers<[1], [0], [0], [1], [0, 0, 1, 1], [], []>} : vector<8x4xbf16>, vector<4x256xbf16>, vector<8x256xf32> -> vector<8x256xf32>
    %54 = arith.addf %48, %53 : vector<8x256xf32>
    %c0_61 = arith.constant 0 : index
    %c0_62 = arith.constant 0 : index
    %55 = vector.load %arg4[%c0_61, %c0_62] : memref<8x1xf32, #tpu.memory_space<vmem>>, vector<8x1xf32>
    %56 = vector.broadcast %55 : vector<8x1xf32> to vector<8x256xf32>
    %57 = arith.addf %54, %56 : vector<8x256xf32>
    %c0_63 = arith.constant 0 : index
    %c0_64 = arith.constant 0 : index
    %c0_65 = arith.constant 0 : index
    %58 = vector.load %arg5[%c0_63, %c0_64, %c0_65] : memref<2x8x256xf32, #tpu.memory_space<vmem>>, vector<1x8x256xf32>
    %59 = vector.shape_cast %58 : vector<1x8x256xf32> to vector<8x256xf32>
    %60 = vector.shape_cast %57 : vector<8x256xf32> to vector<1x8x256xf32>
    tpu.vector_store %arg5[%c0_63, %c0_64, %c0_65], %60 {strides = array<i32>} : memref<2x8x256xf32, #tpu.memory_space<vmem>>, vector<1x8x256xf32>,
    %cst_66 = arith.constant 0.000000e+00 : f32
    %61 = vector.broadcast %cst_66 : f32 to vector<8x256xf32>
    %c1_67 = arith.constant 1 : index
    %c0_68 = arith.constant 0 : index
    %c0_69 = arith.constant 0 : index
    %c0_70 = arith.constant 0 : index
    %62 = vector.load %arg2[%c1_67, %c0_68, %c0_69, %c0_70] : memref<2x3x4x288xbf16, #tpu.memory_space<vmem>>, vector<1x1x4x256xbf16>
    %63 = vector.shape_cast %62 : vector<1x1x4x256xbf16> to vector<4x256xbf16>
    %c0_71 = arith.constant 0 : index
    %c0_72 = arith.constant 0 : index
    %c0_73 = arith.constant 0 : index
    %64 = vector.load %arg3[%c0_71, %c0_72, %c0_73] : memref<9x8x4xbf16, #tpu.memory_space<vmem>>, vector<1x8x4xbf16>
    %65 = vector.shape_cast %64 : vector<1x8x4xbf16> to vector<8x4xbf16>
    %cst_74 = arith.constant dense<0.000000e+00> : vector<8x256xf32>
    %66 = tpu.matmul %65, %63, %cst_74 {dimension_numbers = #tpu.dot_dimension_numbers<[1], [0], [0], [1], [0, 0, 1, 1], [], []>} : vector<8x4xbf16>, vector<4x256xbf16>, vector<8x256xf32> -> vector<8x256xf32>
    %67 = arith.addf %61, %66 : vector<8x256xf32>
    %c1_75 = arith.constant 1 : index
    %c1_76 = arith.constant 1 : index
    %c0_77 = arith.constant 0 : index
    %c0_78 = arith.constant 0 : index
    %68 = vector.load %arg2[%c1_75, %c1_76, %c0_77, %c0_78] : memref<2x3x4x288xbf16, #tpu.memory_space<vmem>>, vector<1x1x4x256xbf16>
    %69 = vector.shape_cast %68 : vector<1x1x4x256xbf16> to vector<4x256xbf16>
    %c1_79 = arith.constant 1 : index
    %c0_80 = arith.constant 0 : index
    %c0_81 = arith.constant 0 : index
    %70 = vector.load %arg3[%c1_79, %c0_80, %c0_81] : memref<9x8x4xbf16, #tpu.memory_space<vmem>>, vector<1x8x4xbf16>
    %71 = vector.shape_cast %70 : vector<1x8x4xbf16> to vector<8x4xbf16>
    %cst_82 = arith.constant dense<0.000000e+00> : vector<8x256xf32>
    %72 = tpu.matmul %71, %69, %cst_82 {dimension_numbers = #tpu.dot_dimension_numbers<[1], [0], [0], [1], [0, 0, 1, 1], [], []>} : vector<8x4xbf16>, vector<4x256xbf16>, vector<8x256xf32> -> vector<8x256xf32>
    %73 = arith.addf %67, %72 : vector<8x256xf32>
    %c1_83 = arith.constant 1 : index
    %c2_84 = arith.constant 2 : index
    %c0_85 = arith.constant 0 : index
    %c0_86 = arith.constant 0 : index
    %74 = vector.load %arg2[%c1_83, %c2_84, %c0_85, %c0_86] : memref<2x3x4x288xbf16, #tpu.memory_space<vmem>>, vector<1x1x4x256xbf16>
    %75 = vector.shape_cast %74 : vector<1x1x4x256xbf16> to vector<4x256xbf16>
    %c2_87 = arith.constant 2 : index
    %c0_88 = arith.constant 0 : index
    %c0_89 = arith.constant 0 : index
    %76 = vector.load %arg3[%c2_87, %c0_88, %c0_89] : memref<9x8x4xbf16, #tpu.memory_space<vmem>>, vector<1x8x4xbf16>
    %77 = vector.shape_cast %76 : vector<1x8x4xbf16> to vector<8x4xbf16>
    %cst_90 = arith.constant dense<0.000000e+00> : vector<8x256xf32>
    %78 = tpu.matmul %77, %75, %cst_90 {dimension_numbers = #tpu.dot_dimension_numbers<[1], [0], [0], [1], [0, 0, 1, 1], [], []>} : vector<8x4xbf16>, vector<4x256xbf16>, vector<8x256xf32> -> vector<8x256xf32>
    %79 = arith.addf %73, %78 : vector<8x256xf32>
    %c1_91 = arith.constant 1 : index
    %c0_92 = arith.constant 0 : index
    %c0_93 = arith.constant 0 : index
    %c16_94 = arith.constant 16 : index
    %80 = vector.load %arg2[%c1_91, %c0_92, %c0_93, %c16_94] : memref<2x3x4x288xbf16, #tpu.memory_space<vmem>>, vector<1x1x4x256xbf16>
    %81 = vector.shape_cast %80 : vector<1x1x4x256xbf16> to vector<4x256xbf16>
    %c3_95 = arith.constant 3 : index
    %c0_96 = arith.constant 0 : index
    %c0_97 = arith.constant 0 : index
    %82 = vector.load %arg3[%c3_95, %c0_96, %c0_97] : memref<9x8x4xbf16, #tpu.memory_space<vmem>>, vector<1x8x4xbf16>
    %83 = vector.shape_cast %82 : vector<1x8x4xbf16> to vector<8x4xbf16>
    %cst_98 = arith.constant dense<0.000000e+00> : vector<8x256xf32>
    %84 = tpu.matmul %83, %81, %cst_98 {dimension_numbers = #tpu.dot_dimension_numbers<[1], [0], [0], [1], [0, 0, 1, 1], [], []>} : vector<8x4xbf16>, vector<4x256xbf16>, vector<8x256xf32> -> vector<8x256xf32>
    %85 = arith.addf %79, %84 : vector<8x256xf32>
    %c1_99 = arith.constant 1 : index
    %c1_100 = arith.constant 1 : index
    %c0_101 = arith.constant 0 : index
    %c16_102 = arith.constant 16 : index
    %86 = vector.load %arg2[%c1_99, %c1_100, %c0_101, %c16_102] : memref<2x3x4x288xbf16, #tpu.memory_space<vmem>>, vector<1x1x4x256xbf16>
    %87 = vector.shape_cast %86 : vector<1x1x4x256xbf16> to vector<4x256xbf16>
    %c4_103 = arith.constant 4 : index
    %c0_104 = arith.constant 0 : index
    %c0_105 = arith.constant 0 : index
    %88 = vector.load %arg3[%c4_103, %c0_104, %c0_105] : memref<9x8x4xbf16, #tpu.memory_space<vmem>>, vector<1x8x4xbf16>
    %89 = vector.shape_cast %88 : vector<1x8x4xbf16> to vector<8x4xbf16>
    %cst_106 = arith.constant dense<0.000000e+00> : vector<8x256xf32>
    %90 = tpu.matmul %89, %87, %cst_106 {dimension_numbers = #tpu.dot_dimension_numbers<[1], [0], [0], [1], [0, 0, 1, 1], [], []>} : vector<8x4xbf16>, vector<4x256xbf16>, vector<8x256xf32> -> vector<8x256xf32>
    %91 = arith.addf %85, %90 : vector<8x256xf32>
    %c1_107 = arith.constant 1 : index
    %c2_108 = arith.constant 2 : index
    %c0_109 = arith.constant 0 : index
    %c16_110 = arith.constant 16 : index
    %92 = vector.load %arg2[%c1_107, %c2_108, %c0_109, %c16_110] : memref<2x3x4x288xbf16, #tpu.memory_space<vmem>>, vector<1x1x4x256xbf16>
    %93 = vector.shape_cast %92 : vector<1x1x4x256xbf16> to vector<4x256xbf16>
    %c5_111 = arith.constant 5 : index
    %c0_112 = arith.constant 0 : index
    %c0_113 = arith.constant 0 : index
    %94 = vector.load %arg3[%c5_111, %c0_112, %c0_113] : memref<9x8x4xbf16, #tpu.memory_space<vmem>>, vector<1x8x4xbf16>
    %95 = vector.shape_cast %94 : vector<1x8x4xbf16> to vector<8x4xbf16>
    %cst_114 = arith.constant dense<0.000000e+00> : vector<8x256xf32>
    %96 = tpu.matmul %95, %93, %cst_114 {dimension_numbers = #tpu.dot_dimension_numbers<[1], [0], [0], [1], [0, 0, 1, 1], [], []>} : vector<8x4xbf16>, vector<4x256xbf16>, vector<8x256xf32> -> vector<8x256xf32>
    %97 = arith.addf %91, %96 : vector<8x256xf32>
    %c1_115 = arith.constant 1 : index
    %c0_116 = arith.constant 0 : index
    %c0_117 = arith.constant 0 : index
    %c32_118 = arith.constant 32 : index
    %98 = vector.load %arg2[%c1_115, %c0_116, %c0_117, %c32_118] : memref<2x3x4x288xbf16, #tpu.memory_space<vmem>>, vector<1x1x4x256xbf16>
    %99 = vector.shape_cast %98 : vector<1x1x4x256xbf16> to vector<4x256xbf16>
    %c6_119 = arith.constant 6 : index
    %c0_120 = arith.constant 0 : index
    %c0_121 = arith.constant 0 : index
    %100 = vector.load %arg3[%c6_119, %c0_120, %c0_121] : memref<9x8x4xbf16, #tpu.memory_space<vmem>>, vector<1x8x4xbf16>
    %101 = vector.shape_cast %100 : vector<1x8x4xbf16> to vector<8x4xbf16>
    %cst_122 = arith.constant dense<0.000000e+00> : vector<8x256xf32>
    %102 = tpu.matmul %101, %99, %cst_122 {dimension_numbers = #tpu.dot_dimension_numbers<[1], [0], [0], [1], [0, 0, 1, 1], [], []>} : vector<8x4xbf16>, vector<4x256xbf16>, vector<8x256xf32> -> vector<8x256xf32>
    %103 = arith.addf %97, %102 : vector<8x256xf32>
    %c1_123 = arith.constant 1 : index
    %c1_124 = arith.constant 1 : index
    %c0_125 = arith.constant 0 : index
    %c32_126 = arith.constant 32 : index
    %104 = vector.load %arg2[%c1_123, %c1_124, %c0_125, %c32_126] : memref<2x3x4x288xbf16, #tpu.memory_space<vmem>>, vector<1x1x4x256xbf16>
    %105 = vector.shape_cast %104 : vector<1x1x4x256xbf16> to vector<4x256xbf16>
    %c7_127 = arith.constant 7 : index
    %c0_128 = arith.constant 0 : index
    %c0_129 = arith.constant 0 : index
    %106 = vector.load %arg3[%c7_127, %c0_128, %c0_129] : memref<9x8x4xbf16, #tpu.memory_space<vmem>>, vector<1x8x4xbf16>
    %107 = vector.shape_cast %106 : vector<1x8x4xbf16> to vector<8x4xbf16>
    %cst_130 = arith.constant dense<0.000000e+00> : vector<8x256xf32>
    %108 = tpu.matmul %107, %105, %cst_130 {dimension_numbers = #tpu.dot_dimension_numbers<[1], [0], [0], [1], [0, 0, 1, 1], [], []>} : vector<8x4xbf16>, vector<4x256xbf16>, vector<8x256xf32> -> vector<8x256xf32>
    %109 = arith.addf %103, %108 : vector<8x256xf32>
    %c1_131 = arith.constant 1 : index
    %c2_132 = arith.constant 2 : index
    %c0_133 = arith.constant 0 : index
    %c32_134 = arith.constant 32 : index
    %110 = vector.load %arg2[%c1_131, %c2_132, %c0_133, %c32_134] : memref<2x3x4x288xbf16, #tpu.memory_space<vmem>>, vector<1x1x4x256xbf16>
    %111 = vector.shape_cast %110 : vector<1x1x4x256xbf16> to vector<4x256xbf16>
    %c8_135 = arith.constant 8 : index
    %c0_136 = arith.constant 0 : index
    %c0_137 = arith.constant 0 : index
    %112 = vector.load %arg3[%c8_135, %c0_136, %c0_137] : memref<9x8x4xbf16, #tpu.memory_space<vmem>>, vector<1x8x4xbf16>
    %113 = vector.shape_cast %112 : vector<1x8x4xbf16> to vector<8x4xbf16>
    %cst_138 = arith.constant dense<0.000000e+00> : vector<8x256xf32>
    %114 = tpu.matmul %113, %111, %cst_138 {dimension_numbers = #tpu.dot_dimension_numbers<[1], [0], [0], [1], [0, 0, 1, 1], [], []>} : vector<8x4xbf16>, vector<4x256xbf16>, vector<8x256xf32> -> vector<8x256xf32>
    %115 = arith.addf %109, %114 : vector<8x256xf32>
    %c0_139 = arith.constant 0 : index
    %c0_140 = arith.constant 0 : index
    %116 = vector.load %arg4[%c0_139, %c0_140] : memref<8x1xf32, #tpu.memory_space<vmem>>, vector<8x1xf32>
    %117 = vector.broadcast %116 : vector<8x1xf32> to vector<8x256xf32>
    %118 = arith.addf %115, %117 : vector<8x256xf32>
    %c1_141 = arith.constant 1 : index
    %c0_142 = arith.constant 0 : index
    %c0_143 = arith.constant 0 : index
    %119 = vector.load %arg5[%c1_141, %c0_142, %c0_143] : memref<2x8x256xf32, #tpu.memory_space<vmem>>, vector<1x8x256xf32>
    %120 = vector.shape_cast %119 : vector<1x8x256xf32> to vector<8x256xf32>
    %121 = vector.shape_cast %118 : vector<8x256xf32> to vector<1x8x256xf32>
    tpu.vector_store %arg5[%c1_141, %c0_142, %c0_143], %121 {strides = array<i32>} : memref<2x8x256xf32, #tpu.memory_space<vmem>>, vector<1x8x256xf32>,
    return
  }
  func.func @transform_0(%arg0: i32, %arg1: i32) -> (i32, i32, i32, i32) {
    %c0_i32 = arith.constant 0 : i32
    %c0_i32_0 = arith.constant 0 : i32
    %c0_i32_1 = arith.constant 0 : i32
    %c0_i32_2 = arith.constant 0 : i32
    return %arg0, %c0_i32, %c0_i32_0, %c0_i32_1 : i32, i32, i32, i32
  }
  func.func @transform_1(%arg0: i32, %arg1: i32) -> (i32, i32, i32) {
    %c0_i32 = arith.constant 0 : i32
    %c0_i32_0 = arith.constant 0 : i32
    %c0_i32_1 = arith.constant 0 : i32
    %c0_i32_2 = arith.constant 0 : i32
    return %c0_i32, %c0_i32_0, %c0_i32_1 : i32, i32, i32
  }
  func.func @transform_2(%arg0: i32, %arg1: i32) -> (i32, i32) {
    %c0_i32 = arith.constant 0 : i32
    %c0_i32_0 = arith.constant 0 : i32
    %c0_i32_1 = arith.constant 0 : i32
    return %c0_i32, %c0_i32_0 : i32, i32
  }
  func.func @transform_3(%arg0: i32, %arg1: i32) -> (i32, i32, i32) {
    %c0_i32 = arith.constant 0 : i32
    %c0_i32_0 = arith.constant 0 : i32
    return %arg0, %c0_i32, %arg1 : i32, i32, i32
  }
}

</mosaic_0001>

<llo_original>
// kernel: tpu_custom_call.1
$region0: #{tpu_custom_call.1}
  #allocation0 [shape = 'u32[]', space=smem, size = 0x4, offset = 0x4, fixed_abs, tag = 'smem constant byte address 0x4 - core index']
  #allocation1 [shape = 'u32[72,128]{1,0:T(1,128)}', space=vmem, size = 0x9000, scoped, tag = 'internal scratch']
  %s0 = inlined_call_operand.vmem [shape: bf16[2,3,4,288], index: 0, kind: input, shape index: {}]
  %s1 = inlined_call_operand.vmem [shape: bf16[9,8,4], index: 1, kind: input, shape index: {}]
  %s2 = inlined_call_operand.vmem [shape: f32[8,1], index: 2, kind: input, shape index: {}]
  %s3 = inlined_call_operand.hbm [shape: f32[2,8,256], index: 3, kind: output, shape index: {}]
  %s4 = sld [smem:[#allocation0]]
  $region22: #{tpu_custom_call.1} parent=0
    _
  %s6 = ssub.s32 1, %s4
  %s7 = scalar_select 0, %s6, %s4
  $region1: #{tpu_custom_call.1} parent=0
    #allocation2 [shape = 'u8[16384]{0}', space=vmem, size = 0x4000, scoped, tag = 'output window, operand 0, single buffered']
    #allocation3 [shape = 's32[1]{0}', space=sflag, size = 0x4, scoped, tag = 'scoped memory for tpu_custom_call.1']
    %8 = vsyncpa [#allocation3], 0
    // Predicated region
    $region2: #{tpu_custom_call.1} parent=1 // pred_check
      _
    $region3: #{tpu_custom_call.1} parent=1 // pred_check_branch
      %10 = sbr.rel (0) target = $region5
    $region4: #{tpu_custom_call.1} parent=1 // pred_region
      _
    $region5: #{tpu_custom_call.1} parent=1 // pred_fallthru
      _
    // Predicated region
    $region6: #{tpu_custom_call.1} parent=1 // pred_check
      _
    $region7: #{tpu_custom_call.1} parent=1 // pred_check_branch
      %12 = sbr.rel (0) target = $region9
    $region8: #{tpu_custom_call.1} parent=1 // pred_region
      _
    $region9: #{tpu_custom_call.1} parent=1 // pred_fallthru
      _
    // Predicated region
    $region10: #{tpu_custom_call.1} parent=1 // pred_check
      _
    $region11: #{tpu_custom_call.1} parent=1 // pred_check_branch
      %14 = sbr.rel (0) target = $region13
    $region12: #{tpu_custom_call.1} parent=1 // pred_region
      _
    $region13: #{tpu_custom_call.1} parent=1 // pred_fallthru
      _
    %v16 = vld [vmem:[%s0] sm:$0xf]
    %v17 = vld [vmem:[%s1] sm:$0xf]
    %s18 = scalar_lea.vmem %s0, 6
    %v19 = vld [vmem:[%s18] sm:$0xf]
    %s20 = scalar_lea.vmem %s1, 4
    %v21 = vld [vmem:[%s20] sm:$0xf]
    %23 = vst [vmem:[#allocation1] ss:$4 sm:$0xff] %v19
    %v24 = vld.sshfl [vmem:[#allocation1] sm:$0xff pattern:$0x73625140]
    %v25 = vld.sshfl [vmem:[#allocation1 + $0x8] sm:$0xff pattern:$0x73625140]
    %vm26 = vcmask 31744
    %v28 = vsel %vm26, %v21, 0
    %vm30 = vcmask 1041408
    %v31 = vsel %vm30, %v24, 0
    %v33 = vsel %vm30, %v25, 0
    %35 = vmatpush.bf16.msra.mxu0 0
    %36 = vmatpush.bf16.msra.mxu0 0
    %37 = vmatpush.bf16.msra.mxu0 0
    %38 = vmatpush.bf16.msra.mxu0 0
    %39 = vmatpush.bf16.msra.mxu0 0
    %40 = vmatpush.bf16.msra.mxu0 0
    %41 = vmatpush.bf16.msra.mxu0 0
    %42 = vmatpush.bf16.msra.mxu0 %v31
    %43 = vmatmul.bf16.gmra.mxu0 %v28
    %v44 = vpop.f32.mrf.mxu0
    %v45 = vadd.f32 0.0, %v44
    %v46 = vpop.f32.mrf.mxu0
    %47 = vdwg.mxu0
    %48 = vmatpush.bf16.msra.mxu0 0
    %49 = vmatpush.bf16.msra.mxu0 0
    %50 = vmatpush.bf16.msra.mxu0 0
    %51 = vmatpush.bf16.msra.mxu0 0
    %52 = vmatpush.bf16.msra.mxu0 0
    %53 = vmatpush.bf16.msra.mxu0 0
    %54 = vmatpush.bf16.msra.mxu0 0
    %55 = vmatpush.bf16.msra.mxu0 %v33
    %56 = vmatmul.bf16.gmra.mxu0 %v28
    %v57 = vpop.f32.mrf.mxu0
    %v58 = vadd.f32 0.0, %v57
    %v59 = vpop.f32.mrf.mxu0
    %60 = vdwg.mxu0
    %62 = vst [vmem:[#allocation1] ss:$4 sm:$0xff] %v16
    %v63 = vld.sshfl [vmem:[#allocation1] sm:$0xff pattern:$0x73625140]
    %v64 = vld.sshfl [vmem:[#allocation1 + $0x8] sm:$0xff pattern:$0x73625140]
    %v66 = vsel %vm26, %v17, 0
    %v68 = vsel %vm30, %v63, 0
    %v70 = vsel %vm30, %v64, 0
    %72 = vmatpush.bf16.msra.mxu0 0
    %73 = vmatpush.bf16.msra.mxu0 0
    %74 = vmatpush.bf16.msra.mxu0 0
    %75 = vmatpush.bf16.msra.mxu0 0
    %76 = vmatpush.bf16.msra.mxu0 0
    %77 = vmatpush.bf16.msra.mxu0 0
    %78 = vmatpush.bf16.msra.mxu0 0
    %79 = vmatpush.bf16.msra.mxu0 %v68
    %80 = vmatmul.bf16.gmra.mxu0 %v66
    %v81 = vpop.f32.mrf.mxu0
    %v82 = vadd.f32 %v45, %v81
    %v83 = vpop.f32.mrf.mxu0
    %84 = vdwg.mxu0
    %85 = vmatpush.bf16.msra.mxu0 0
    %86 = vmatpush.bf16.msra.mxu0 0
    %87 = vmatpush.bf16.msra.mxu0 0
    %88 = vmatpush.bf16.msra.mxu0 0
    %89 = vmatpush.bf16.msra.mxu0 0
    %90 = vmatpush.bf16.msra.mxu0 0
    %91 = vmatpush.bf16.msra.mxu0 0
    %92 = vmatpush.bf16.msra.mxu0 %v70
    %93 = vmatmul.bf16.gmra.mxu0 %v66
    %v94 = vpop.f32.mrf.mxu0
    %v95 = vadd.f32 %v58, %v94
    %v96 = vpop.f32.mrf.mxu0
    %97 = vdwg.mxu0
    %s98 = scalar_lea.vmem %s0, 12
    %v99 = vld [vmem:[%s98] sm:$0xf]
    %s100 = scalar_lea.vmem %s1, 8
    %v101 = vld [vmem:[%s100] sm:$0xf]
    %103 = vst [vmem:[#allocation1] ss:$4 sm:$0xff] %v99
    %v104 = vld.sshfl [vmem:[#allocation1] sm:$0xff pattern:$0x73625140]
    %v105 = vld.sshfl [vmem:[#allocation1 + $0x8] sm:$0xff pattern:$0x73625140]
    %v107 = vsel %vm26, %v101, 0
    %v109 = vsel %vm30, %v104, 0
    %v111 = vsel %vm30, %v105, 0
    %113 = vmatpush.bf16.msra.mxu0 0
    %114 = vmatpush.bf16.msra.mxu0 0
    %115 = vmatpush.bf16.msra.mxu0 0
    %116 = vmatpush.bf16.msra.mxu0 0
    %117 = vmatpush.bf16.msra.mxu0 0
    %118 = vmatpush.bf16.msra.mxu0 0
    %119 = vmatpush.bf16.msra.mxu0 0
    %120 = vmatpush.bf16.msra.mxu0 %v109
    %121 = vmatmul.bf16.gmra.mxu0 %v107
    %v122 = vpop.f32.mrf.mxu0
    %v123 = vadd.f32 0.0, %v122
    %v124 = vpop.f32.mrf.mxu0
    %125 = vdwg.mxu0
    %126 = vmatpush.bf16.msra.mxu0 0
    %127 = vmatpush.bf16.msra.mxu0 0
    %128 = vmatpush.bf16.msra.mxu0 0
    %129 = vmatpush.bf16.msra.mxu0 0
    %130 = vmatpush.bf16.msra.mxu0 0
    %131 = vmatpush.bf16.msra.mxu0 0
    %132 = vmatpush.bf16.msra.mxu0 0
    %133 = vmatpush.bf16.msra.mxu0 %v111
    %134 = vmatmul.bf16.gmra.mxu0 %v107
    %v135 = vpop.f32.mrf.mxu0
    %v136 = vadd.f32 0.0, %v135
    %v137 = vpop.f32.mrf.mxu0
    %138 = vdwg.mxu0
    %v139 = vadd.f32 %v82, %v123
    %v140 = vadd.f32 %v95, %v136
    %v141 = vld [vmem:[%s0] sm:$0x3f]
    %s142 = scalar_lea.vmem %s1, 12
    %v143 = vld [vmem:[%s142] sm:$0xf]
    %145 = vst [vmem:[#allocation1] ss:$4 sm:$0xff] %v141
    %v146 = vld.sshfl [vmem:[#allocation1] sm:$0xff pattern:$0x73625140]
    %v148 = vld.sshfl [vmem:[#allocation1 + $0x8] sm:$0xff pattern:$0x73625140]
    %v150 = vld.sshfl [vmem:[#allocation1 + $0x10] sm:$0xff pattern:$0x73625140]
    %152 = vrot.lane.b32.xlu0 %v146, 112
    %v153 = vpop.permute.xlu0 %152
    %154 = vrot.lane.b32.xlu0 %v148, 112
    %v155 = vpop.permute.xlu0 %154
    %156 = vrot.lane.b32.xlu0 %v150, 112
    %v157 = vpop.permute.xlu0 %156
    %vm158 = vcmask 916480
    %v159 = vsel %vm158, %v153, %v155
    %v160 = vsel %vm158, %v155, %v157
    %v162 = vsel %vm26, %v143, 0
    %v165 = vsel %vm30, %v159, 0
    %v168 = vsel %vm30, %v160, 0
    %170 = vmatpush.bf16.msra.mxu0 0
    %171 = vmatpush.bf16.msra.mxu0 0
    %172 = vmatpush.bf16.msra.mxu0 0
    %173 = vmatpush.bf16.msra.mxu0 0
    %174 = vmatpush.bf16.msra.mxu0 0
    %175 = vmatpush.bf16.msra.mxu0 0
    %176 = vmatpush.bf16.msra.mxu0 0
    %177 = vmatpush.bf16.msra.mxu0 %v165
    %178 = vmatmul.bf16.gmra.mxu0 %v162
    %v179 = vpop.f32.mrf.mxu0
    %v180 = vadd.f32 0.0, %v179
    %v181 = vpop.f32.mrf.mxu0
    %182 = vdwg.mxu0
    %183 = vmatpush.bf16.msra.mxu0 0
    %184 = vmatpush.bf16.msra.mxu0 0
    %185 = vmatpush.bf16.msra.mxu0 0
    %186 = vmatpush.bf16.msra.mxu0 0
    %187 = vmatpush.bf16.msra.mxu0 0
    %188 = vmatpush.bf16.msra.mxu0 0
    %189 = vmatpush.bf16.msra.mxu0 0
    %190 = vmatpush.bf16.msra.mxu0 %v168
    %191 = vmatmul.bf16.gmra.mxu0 %v162
    %v192 = vpop.f32.mrf.mxu0
    %v193 = vadd.f32 0.0, %v192
    %v194 = vpop.f32.mrf.mxu0
    %195 = vdwg.mxu0
    %v196 = vadd.f32 %v139, %v180
    %v197 = vadd.f32 %v140, %v193
    %v198 = vld [vmem:[%s18] sm:$0x3f]
    %s199 = scalar_lea.vmem %s1, 16
    %v200 = vld [vmem:[%s199] sm:$0xf]
    %202 = vst [vmem:[#allocation1] ss:$4 sm:$0xff] %v198
    %v203 = vld.sshfl [vmem:[#allocation1] sm:$0xff pattern:$0x73625140]
    %v205 = vld.sshfl [vmem:[#allocation1 + $0x8] sm:$0xff pattern:$0x73625140]
    %v207 = vld.sshfl [vmem:[#allocation1 + $0x10] sm:$0xff pattern:$0x73625140]
    %209 = vrot.lane.b32.xlu0 %v203, 112
    %v210 = vpop.permute.xlu0 %209
    %211 = vrot.lane.b32.xlu0 %v205, 112
    %v212 = vpop.permute.xlu0 %211
    %213 = vrot.lane.b32.xlu0 %v207, 112
    %v214 = vpop.permute.xlu0 %213
    %v215 = vsel %vm158, %v210, %v212
    %v216 = vsel %vm158, %v212, %v214
    %v218 = vsel %vm26, %v200, 0
    %v221 = vsel %vm30, %v215, 0
    %v224 = vsel %vm30, %v216, 0
    %226 = vmatpush.bf16.msra.mxu0 0
    %227 = vmatpush.bf16.msra.mxu0 0
    %228 = vmatpush.bf16.msra.mxu0 0
    %229 = vmatpush.bf16.msra.mxu0 0
    %230 = vmatpush.bf16.msra.mxu0 0
    %231 = vmatpush.bf16.msra.mxu0 0
    %232 = vmatpush.bf16.msra.mxu0 0
    %233 = vmatpush.bf16.msra.mxu0 %v221
    %234 = vmatmul.bf16.gmra.mxu0 %v218
    %v235 = vpop.f32.mrf.mxu0
    %v236 = vadd.f32 0.0, %v235
    %v237 = vpop.f32.mrf.mxu0
    %238 = vdwg.mxu0
    %239 = vmatpush.bf16.msra.mxu0 0
    %240 = vmatpush.bf16.msra.mxu0 0
    %241 = vmatpush.bf16.msra.mxu0 0
    %242 = vmatpush.bf16.msra.mxu0 0
    %243 = vmatpush.bf16.msra.mxu0 0
    %244 = vmatpush.bf16.msra.mxu0 0
    %245 = vmatpush.bf16.msra.mxu0 0
    %246 = vmatpush.bf16.msra.mxu0 %v224
    %247 = vmatmul.bf16.gmra.mxu0 %v218
    %v248 = vpop.f32.mrf.mxu0
    %v249 = vadd.f32 0.0, %v248
    %v250 = vpop.f32.mrf.mxu0
    %251 = vdwg.mxu0
    %v252 = vadd.f32 %v196, %v236
    %v253 = vadd.f32 %v197, %v249
    %v254 = vld [vmem:[%s98] sm:$0x3f]
    %s255 = scalar_lea.vmem %s1, 20
    %v256 = vld [vmem:[%s255] sm:$0xf]
    %258 = vst [vmem:[#allocation1] ss:$4 sm:$0xff] %v254
    %v259 = vld.sshfl [vmem:[#allocation1] sm:$0xff pattern:$0x73625140]
    %v261 = vld.sshfl [vmem:[#allocation1 + $0x8] sm:$0xff pattern:$0x73625140]
    %v263 = vld.sshfl [vmem:[#allocation1 + $0x10] sm:$0xff pattern:$0x73625140]
    %265 = vrot.lane.b32.xlu0 %v259, 112
    %v266 = vpop.permute.xlu0 %265
    %267 = vrot.lane.b32.xlu0 %v261, 112
    %v268 = vpop.permute.xlu0 %267
    %269 = vrot.lane.b32.xlu0 %v263, 112
    %v270 = vpop.permute.xlu0 %269
    %v271 = vsel %vm158, %v266, %v268
    %v272 = vsel %vm158, %v268, %v270
    %v274 = vsel %vm26, %v256, 0
    %v277 = vsel %vm30, %v271, 0
    %v280 = vsel %vm30, %v272, 0
    %282 = vmatpush.bf16.msra.mxu0 0
    %283 = vmatpush.bf16.msra.mxu0 0
    %284 = vmatpush.bf16.msra.mxu0 0
    %285 = vmatpush.bf16.msra.mxu0 0
    %286 = vmatpush.bf16.msra.mxu0 0
    %287 = vmatpush.bf16.msra.mxu0 0
    %288 = vmatpush.bf16.msra.mxu0 0
    %289 = vmatpush.bf16.msra.mxu0 %v277
    %290 = vmatmul.bf16.gmra.mxu0 %v274
    %v291 = vpop.f32.mrf.mxu0
    %v292 = vadd.f32 0.0, %v291
    %v293 = vpop.f32.mrf.mxu0
    %294 = vdwg.mxu0
    %295 = vmatpush.bf16.msra.mxu0 0
    %296 = vmatpush.bf16.msra.mxu0 0
    %297 = vmatpush.bf16.msra.mxu0 0
    %298 = vmatpush.bf16.msra.mxu0 0
    %299 = vmatpush.bf16.msra.mxu0 0
    %300 = vmatpush.bf16.msra.mxu0 0
    %301 = vmatpush.bf16.msra.mxu0 0
    %302 = vmatpush.bf16.msra.mxu0 %v280
    %303 = vmatmul.bf16.gmra.mxu0 %v274
    %v304 = vpop.f32.mrf.mxu0
    %v305 = vadd.f32 0.0, %v304
    %v306 = vpop.f32.mrf.mxu0
    %307 = vdwg.mxu0
    %v308 = vadd.f32 %v252, %v292
    %v309 = vadd.f32 %v253, %v305
    %v310 = vld [vmem:[%s0] sm:$0x3f]
    %s311 = scalar_lea.vmem %s1, 24
    %v312 = vld [vmem:[%s311] sm:$0xf]
    %314 = vst [vmem:[#allocation1] ss:$4 sm:$0xff] %v310
    %v315 = vld.sshfl [vmem:[#allocation1] sm:$0xff pattern:$0x73625140]
    %v317 = vld.sshfl [vmem:[#allocation1 + $0x8] sm:$0xff pattern:$0x73625140]
    %v319 = vld.sshfl [vmem:[#allocation1 + $0x10] sm:$0xff pattern:$0x73625140]
    %321 = vrot.lane.b32.xlu0 %v315, 96
    %v322 = vpop.permute.xlu0 %321
    %323 = vrot.lane.b32.xlu0 %v317, 96
    %v324 = vpop.permute.xlu0 %323
    %325 = vrot.lane.b32.xlu0 %v319, 96
    %v326 = vpop.permute.xlu0 %325
    %vm327 = vcmask 785408
    %v328 = vsel %vm327, %v322, %v324
    %v329 = vsel %vm327, %v324, %v326
    %v331 = vsel %vm26, %v312, 0
    %v334 = vsel %vm30, %v328, 0
    %v337 = vsel %vm30, %v329, 0
    %339 = vmatpush.bf16.msra.mxu0 0
    %340 = vmatpush.bf16.msra.mxu0 0
    %341 = vmatpush.bf16.msra.mxu0 0
    %342 = vmatpush.bf16.msra.mxu0 0
    %343 = vmatpush.bf16.msra.mxu0 0
    %344 = vmatpush.bf16.msra.mxu0 0
    %345 = vmatpush.bf16.msra.mxu0 0
    %346 = vmatpush.bf16.msra.mxu0 %v334
    %347 = vmatmul.bf16.gmra.mxu0 %v331
    %v348 = vpop.f32.mrf.mxu0
    %v349 = vadd.f32 0.0, %v348
    %v350 = vpop.f32.mrf.mxu0
    %351 = vdwg.mxu0
    %352 = vmatpush.bf16.msra.mxu0 0
    %353 = vmatpush.bf16.msra.mxu0 0
    %354 = vmatpush.bf16.msra.mxu0 0
    %355 = vmatpush.bf16.msra.mxu0 0
    %356 = vmatpush.bf16.msra.mxu0 0
    %357 = vmatpush.bf16.msra.mxu0 0
    %358 = vmatpush.bf16.msra.mxu0 0
    %359 = vmatpush.bf16.msra.mxu0 %v337
    %360 = vmatmul.bf16.gmra.mxu0 %v331
    %v361 = vpop.f32.mrf.mxu0
    %v362 = vadd.f32 0.0, %v361
    %v363 = vpop.f32.mrf.mxu0
    %364 = vdwg.mxu0
    %v365 = vadd.f32 %v308, %v349
    %v366 = vadd.f32 %v309, %v362
    %v367 = vld [vmem:[%s18] sm:$0x3f]
    %s368 = scalar_lea.vmem %s1, 28
    %v369 = vld [vmem:[%s368] sm:$0xf]
    %371 = vst [vmem:[#allocation1] ss:$4 sm:$0xff] %v367
    %v372 = vld.sshfl [vmem:[#allocation1] sm:$0xff pattern:$0x73625140]
    %v374 = vld.sshfl [vmem:[#allocation1 + $0x8] sm:$0xff pattern:$0x73625140]
    %v376 = vld.sshfl [vmem:[#allocation1 + $0x10] sm:$0xff pattern:$0x73625140]
    %378 = vrot.lane.b32.xlu0 %v372, 96
    %v379 = vpop.permute.xlu0 %378
    %380 = vrot.lane.b32.xlu0 %v374, 96
    %v381 = vpop.permute.xlu0 %380
    %382 = vrot.lane.b32.xlu0 %v376, 96
    %v383 = vpop.permute.xlu0 %382
    %v384 = vsel %vm327, %v379, %v381
    %v385 = vsel %vm327, %v381, %v383
    %v387 = vsel %vm26, %v369, 0
    %v390 = vsel %vm30, %v384, 0
    %v393 = vsel %vm30, %v385, 0
    %395 = vmatpush.bf16.msra.mxu0 0
    %396 = vmatpush.bf16.msra.mxu0 0
    %397 = vmatpush.bf16.msra.mxu0 0
    %398 = vmatpush.bf16.msra.mxu0 0
    %399 = vmatpush.bf16.msra.mxu0 0
    %400 = vmatpush.bf16.msra.mxu0 0
    %401 = vmatpush.bf16.msra.mxu0 0
    %402 = vmatpush.bf16.msra.mxu0 %v390
    %403 = vmatmul.bf16.gmra.mxu0 %v387
    %v404 = vpop.f32.mrf.mxu0
    %v405 = vadd.f32 0.0, %v404
    %v406 = vpop.f32.mrf.mxu0
    %407 = vdwg.mxu0
    %408 = vmatpush.bf16.msra.mxu0 0
    %409 = vmatpush.bf16.msra.mxu0 0
    %410 = vmatpush.bf16.msra.mxu0 0
    %411 = vmatpush.bf16.msra.mxu0 0
    %412 = vmatpush.bf16.msra.mxu0 0
    %413 = vmatpush.bf16.msra.mxu0 0
    %414 = vmatpush.bf16.msra.mxu0 0
    %415 = vmatpush.bf16.msra.mxu0 %v393
    %416 = vmatmul.bf16.gmra.mxu0 %v387
    %v417 = vpop.f32.mrf.mxu0
    %v418 = vadd.f32 0.0, %v417
    %v419 = vpop.f32.mrf.mxu0
    %420 = vdwg.mxu0
    %v421 = vadd.f32 %v365, %v405
    %v422 = vadd.f32 %v366, %v418
    %v423 = vld [vmem:[%s98] sm:$0x3f]
    %s424 = scalar_lea.vmem %s1, 32
    %v425 = vld [vmem:[%s424] sm:$0xf]
    %427 = vst [vmem:[#allocation1] ss:$4 sm:$0xff] %v423
    %v428 = vld.sshfl [vmem:[#allocation1] sm:$0xff pattern:$0x73625140]
    %v430 = vld.sshfl [vmem:[#allocation1 + $0x8] sm:$0xff pattern:$0x73625140]
    %v432 = vld.sshfl [vmem:[#allocation1 + $0x10] sm:$0xff pattern:$0x73625140]
    %434 = vrot.lane.b32.xlu0 %v428, 96
    %v435 = vpop.permute.xlu0 %434
    %436 = vrot.lane.b32.xlu0 %v430, 96
    %v437 = vpop.permute.xlu0 %436
    %438 = vrot.lane.b32.xlu0 %v432, 96
    %v439 = vpop.permute.xlu0 %438
    %v440 = vsel %vm327, %v435, %v437
    %v441 = vsel %vm327, %v437, %v439
    %v443 = vsel %vm26, %v425, 0
    %v446 = vsel %vm30, %v440, 0
    %v449 = vsel %vm30, %v441, 0
    %451 = vmatpush.bf16.msra.mxu0 0
    %452 = vmatpush.bf16.msra.mxu0 0
    %453 = vmatpush.bf16.msra.mxu0 0
    %454 = vmatpush.bf16.msra.mxu0 0
    %455 = vmatpush.bf16.msra.mxu0 0
    %456 = vmatpush.bf16.msra.mxu0 0
    %457 = vmatpush.bf16.msra.mxu0 0
    %458 = vmatpush.bf16.msra.mxu0 %v446
    %459 = vmatmul.bf16.gmra.mxu0 %v443
    %v460 = vpop.f32.mrf.mxu0
    %v461 = vadd.f32 0.0, %v460
    %v462 = vpop.f32.mrf.mxu0
    %463 = vdwg.mxu0
    %464 = vmatpush.bf16.msra.mxu0 0
    %465 = vmatpush.bf16.msra.mxu0 0
    %466 = vmatpush.bf16.msra.mxu0 0
    %467 = vmatpush.bf16.msra.mxu0 0
    %468 = vmatpush.bf16.msra.mxu0 0
    %469 = vmatpush.bf16.msra.mxu0 0
    %470 = vmatpush.bf16.msra.mxu0 0
    %471 = vmatpush.bf16.msra.mxu0 %v449
    %472 = vmatmul.bf16.gmra.mxu0 %v443
    %v473 = vpop.f32.mrf.mxu0
    %v474 = vadd.f32 0.0, %v473
    %v475 = vpop.f32.mrf.mxu0
    %476 = vdwg.mxu0
    %v477 = vadd.f32 %v421, %v461
    %v478 = vadd.f32 %v422, %v474
    %v479 = vld [vmem:[%s2] sm:$0xff]
    %481 = vset.pattern.permute.xlu0 0
    %482 = vperm.xlu0 %481, %v479
    %v483 = vpop.permute.xlu0 %482
    %v485 = vadd.f32 %v477, %v483
    %v486 = vadd.f32 %v478, %v483
    %487 = vst [vmem:[#allocation2] sm:$0xff] %v485
    %488 = vst [vmem:[#allocation2 + $0x8] sm:$0xff] %v486
    %s489 = scalar_lea.vmem %s0, 18
    %v490 = vld [vmem:[%s489] sm:$0xf]
    %v491 = vld [vmem:[%s1] sm:$0xf]
    %s492 = scalar_lea.vmem %s0, 24
    %v493 = vld [vmem:[%s492] sm:$0xf]
    %v494 = vld [vmem:[%s20] sm:$0xf]
    %496 = vst [vmem:[#allocation1] ss:$4 sm:$0xff] %v493
    %v497 = vld.sshfl [vmem:[#allocation1] sm:$0xff pattern:$0x73625140]
    %v498 = vld.sshfl [vmem:[#allocation1 + $0x8] sm:$0xff pattern:$0x73625140]
    %v500 = vsel %vm26, %v494, 0
    %v502 = vsel %vm30, %v497, 0
    %v504 = vsel %vm30, %v498, 0
    %506 = vmatpush.bf16.msra.mxu0 0
    %507 = vmatpush.bf16.msra.mxu0 0
    %508 = vmatpush.bf16.msra.mxu0 0
    %509 = vmatpush.bf16.msra.mxu0 0
    %510 = vmatpush.bf16.msra.mxu0 0
    %511 = vmatpush.bf16.msra.mxu0 0
    %512 = vmatpush.bf16.msra.mxu0 0
    %513 = vmatpush.bf16.msra.mxu0 %v502
    %514 = vmatmul.bf16.gmra.mxu0 %v500
    %v515 = vpop.f32.mrf.mxu0
    %v516 = vadd.f32 0.0, %v515
    %v517 = vpop.f32.mrf.mxu0
    %518 = vdwg.mxu0
    %519 = vmatpush.bf16.msra.mxu0 0
    %520 = vmatpush.bf16.msra.mxu0 0
    %521 = vmatpush.bf16.msra.mxu0 0
    %522 = vmatpush.bf16.msra.mxu0 0
    %523 = vmatpush.bf16.msra.mxu0 0
    %524 = vmatpush.bf16.msra.mxu0 0
    %525 = vmatpush.bf16.msra.mxu0 0
    %526 = vmatpush.bf16.msra.mxu0 %v504
    %527 = vmatmul.bf16.gmra.mxu0 %v500
    %v528 = vpop.f32.mrf.mxu0
    %v529 = vadd.f32 0.0, %v528
    %v530 = vpop.f32.mrf.mxu0
    %531 = vdwg.mxu0
    %533 = vst [vmem:[#allocation1] ss:$4 sm:$0xff] %v490
    %v534 = vld.sshfl [vmem:[#allocation1] sm:$0xff pattern:$0x73625140]
    %v535 = vld.sshfl [vmem:[#allocation1 + $0x8] sm:$0xff pattern:$0x73625140]
    %v537 = vsel %vm26, %v491, 0
    %v539 = vsel %vm30, %v534, 0
    %v541 = vsel %vm30, %v535, 0
    %543 = vmatpush.bf16.msra.mxu0 0
    %544 = vmatpush.bf16.msra.mxu0 0
    %545 = vmatpush.bf16.msra.mxu0 0
    %546 = vmatpush.bf16.msra.mxu0 0
    %547 = vmatpush.bf16.msra.mxu0 0
    %548 = vmatpush.bf16.msra.mxu0 0
    %549 = vmatpush.bf16.msra.mxu0 0
    %550 = vmatpush.bf16.msra.mxu0 %v539
    %551 = vmatmul.bf16.gmra.mxu0 %v537
    %v552 = vpop.f32.mrf.mxu0
    %v553 = vadd.f32 %v516, %v552
    %v554 = vpop.f32.mrf.mxu0
    %555 = vdwg.mxu0
    %556 = vmatpush.bf16.msra.mxu0 0
    %557 = vmatpush.bf16.msra.mxu0 0
    %558 = vmatpush.bf16.msra.mxu0 0
    %559 = vmatpush.bf16.msra.mxu0 0
    %560 = vmatpush.bf16.msra.mxu0 0
    %561 = vmatpush.bf16.msra.mxu0 0
    %562 = vmatpush.bf16.msra.mxu0 0
    %563 = vmatpush.bf16.msra.mxu0 %v541
    %564 = vmatmul.bf16.gmra.mxu0 %v537
    %v565 = vpop.f32.mrf.mxu0
    %v566 = vadd.f32 %v529, %v565
    %v567 = vpop.f32.mrf.mxu0
    %568 = vdwg.mxu0
    %s569 = scalar_lea.vmem %s0, 30
    %v570 = vld [vmem:[%s569] sm:$0xf]
    %v571 = vld [vmem:[%s100] sm:$0xf]
    %573 = vst [vmem:[#allocation1] ss:$4 sm:$0xff] %v570
    %v574 = vld.sshfl [vmem:[#allocation1] sm:$0xff pattern:$0x73625140]
    %v575 = vld.sshfl [vmem:[#allocation1 + $0x8] sm:$0xff pattern:$0x73625140]
    %v577 = vsel %vm26, %v571, 0
    %v579 = vsel %vm30, %v574, 0
    %v581 = vsel %vm30, %v575, 0
    %583 = vmatpush.bf16.msra.mxu0 0
    %584 = vmatpush.bf16.msra.mxu0 0
    %585 = vmatpush.bf16.msra.mxu0 0
    %586 = vmatpush.bf16.msra.mxu0 0
    %587 = vmatpush.bf16.msra.mxu0 0
    %588 = vmatpush.bf16.msra.mxu0 0
    %589 = vmatpush.bf16.msra.mxu0 0
    %590 = vmatpush.bf16.msra.mxu0 %v579
    %591 = vmatmul.bf16.gmra.mxu0 %v577
    %v592 = vpop.f32.mrf.mxu0
    %v593 = vadd.f32 0.0, %v592
    %v594 = vpop.f32.mrf.mxu0
    %595 = vdwg.mxu0
    %596 = vmatpush.bf16.msra.mxu0 0
    %597 = vmatpush.bf16.msra.mxu0 0
    %598 = vmatpush.bf16.msra.mxu0 0
    %599 = vmatpush.bf16.msra.mxu0 0
    %600 = vmatpush.bf16.msra.mxu0 0
    %601 = vmatpush.bf16.msra.mxu0 0
    %602 = vmatpush.bf16.msra.mxu0 0
    %603 = vmatpush.bf16.msra.mxu0 %v581
    %604 = vmatmul.bf16.gmra.mxu0 %v577
    %v605 = vpop.f32.mrf.mxu0
    %v606 = vadd.f32 0.0, %v605
    %v607 = vpop.f32.mrf.mxu0
    %608 = vdwg.mxu0
    %v609 = vadd.f32 %v553, %v593
    %v610 = vadd.f32 %v566, %v606
    %v611 = vld [vmem:[%s489] sm:$0x3f]
    %v612 = vld [vmem:[%s142] sm:$0xf]
    %614 = vst [vmem:[#allocation1] ss:$4 sm:$0xff] %v611
    %v615 = vld.sshfl [vmem:[#allocation1] sm:$0xff pattern:$0x73625140]
    %v617 = vld.sshfl [vmem:[#allocation1 + $0x8] sm:$0xff pattern:$0x73625140]
    %v619 = vld.sshfl [vmem:[#allocation1 + $0x10] sm:$0xff pattern:$0x73625140]
    %621 = vrot.lane.b32.xlu0 %v615, 112
    %v622 = vpop.permute.xlu0 %621
    %623 = vrot.lane.b32.xlu0 %v617, 112
    %v624 = vpop.permute.xlu0 %623
    %625 = vrot.lane.b32.xlu0 %v619, 112
    %v626 = vpop.permute.xlu0 %625
    %v627 = vsel %vm158, %v622, %v624
    %v628 = vsel %vm158, %v624, %v626
    %v630 = vsel %vm26, %v612, 0
    %v633 = vsel %vm30, %v627, 0
    %v636 = vsel %vm30, %v628, 0
    %638 = vmatpush.bf16.msra.mxu0 0
    %639 = vmatpush.bf16.msra.mxu0 0
    %640 = vmatpush.bf16.msra.mxu0 0
    %641 = vmatpush.bf16.msra.mxu0 0
    %642 = vmatpush.bf16.msra.mxu0 0
    %643 = vmatpush.bf16.msra.mxu0 0
    %644 = vmatpush.bf16.msra.mxu0 0
    %645 = vmatpush.bf16.msra.mxu0 %v633
    %646 = vmatmul.bf16.gmra.mxu0 %v630
    %v647 = vpop.f32.mrf.mxu0
    %v648 = vadd.f32 0.0, %v647
    %v649 = vpop.f32.mrf.mxu0
    %650 = vdwg.mxu0
    %651 = vmatpush.bf16.msra.mxu0 0
    %652 = vmatpush.bf16.msra.mxu0 0
    %653 = vmatpush.bf16.msra.mxu0 0
    %654 = vmatpush.bf16.msra.mxu0 0
    %655 = vmatpush.bf16.msra.mxu0 0
    %656 = vmatpush.bf16.msra.mxu0 0
    %657 = vmatpush.bf16.msra.mxu0 0
    %658 = vmatpush.bf16.msra.mxu0 %v636
    %659 = vmatmul.bf16.gmra.mxu0 %v630
    %v660 = vpop.f32.mrf.mxu0
    %v661 = vadd.f32 0.0, %v660
    %v662 = vpop.f32.mrf.mxu0
    %663 = vdwg.mxu0
    %v664 = vadd.f32 %v609, %v648
    %v665 = vadd.f32 %v610, %v661
    %v666 = vld [vmem:[%s492] sm:$0x3f]
    %v667 = vld [vmem:[%s199] sm:$0xf]
    %669 = vst [vmem:[#allocation1] ss:$4 sm:$0xff] %v666
    %v670 = vld.sshfl [vmem:[#allocation1] sm:$0xff pattern:$0x73625140]
    %v672 = vld.sshfl [vmem:[#allocation1 + $0x8] sm:$0xff pattern:$0x73625140]
    %v674 = vld.sshfl [vmem:[#allocation1 + $0x10] sm:$0xff pattern:$0x73625140]
    %676 = vrot.lane.b32.xlu0 %v670, 112
    %v677 = vpop.permute.xlu0 %676
    %678 = vrot.lane.b32.xlu0 %v672, 112
    %v679 = vpop.permute.xlu0 %678
    %680 = vrot.lane.b32.xlu0 %v674, 112
    %v681 = vpop.permute.xlu0 %680
    %v682 = vsel %vm158, %v677, %v679
    %v683 = vsel %vm158, %v679, %v681
    %v685 = vsel %vm26, %v667, 0
    %v688 = vsel %vm30, %v682, 0
    %v691 = vsel %vm30, %v683, 0
    %693 = vmatpush.bf16.msra.mxu0 0
    %694 = vmatpush.bf16.msra.mxu0 0
    %695 = vmatpush.bf16.msra.mxu0 0
    %696 = vmatpush.bf16.msra.mxu0 0
    %697 = vmatpush.bf16.msra.mxu0 0
    %698 = vmatpush.bf16.msra.mxu0 0
    %699 = vmatpush.bf16.msra.mxu0 0
    %700 = vmatpush.bf16.msra.mxu0 %v688
    %701 = vmatmul.bf16.gmra.mxu0 %v685
    %v702 = vpop.f32.mrf.mxu0
    %v703 = vadd.f32 0.0, %v702
    %v704 = vpop.f32.mrf.mxu0
    %705 = vdwg.mxu0
    %706 = vmatpush.bf16.msra.mxu0 0
    %707 = vmatpush.bf16.msra.mxu0 0
    %708 = vmatpush.bf16.msra.mxu0 0
    %709 = vmatpush.bf16.msra.mxu0 0
    %710 = vmatpush.bf16.msra.mxu0 0
    %711 = vmatpush.bf16.msra.mxu0 0
    %712 = vmatpush.bf16.msra.mxu0 0
    %713 = vmatpush.bf16.msra.mxu0 %v691
    %714 = vmatmul.bf16.gmra.mxu0 %v685
    %v715 = vpop.f32.mrf.mxu0
    %v716 = vadd.f32 0.0, %v715
    %v717 = vpop.f32.mrf.mxu0
    %718 = vdwg.mxu0
    %v719 = vadd.f32 %v664, %v703
    %v720 = vadd.f32 %v665, %v716
    %v721 = vld [vmem:[%s569] sm:$0x3f]
    %v722 = vld [vmem:[%s255] sm:$0xf]
    %724 = vst [vmem:[#allocation1] ss:$4 sm:$0xff] %v721
    %v725 = vld.sshfl [vmem:[#allocation1] sm:$0xff pattern:$0x73625140]
    %v727 = vld.sshfl [vmem:[#allocation1 + $0x8] sm:$0xff pattern:$0x73625140]
    %v729 = vld.sshfl [vmem:[#allocation1 + $0x10] sm:$0xff pattern:$0x73625140]
    %731 = vrot.lane.b32.xlu0 %v725, 112
    %v732 = vpop.permute.xlu0 %731
    %733 = vrot.lane.b32.xlu0 %v727, 112
    %v734 = vpop.permute.xlu0 %733
    %735 = vrot.lane.b32.xlu0 %v729, 112
    %v736 = vpop.permute.xlu0 %735
    %v737 = vsel %vm158, %v732, %v734
    %v738 = vsel %vm158, %v734, %v736
    %v740 = vsel %vm26, %v722, 0
    %v743 = vsel %vm30, %v737, 0
    %v746 = vsel %vm30, %v738, 0
    %748 = vmatpush.bf16.msra.mxu0 0
    %749 = vmatpush.bf16.msra.mxu0 0
    %750 = vmatpush.bf16.msra.mxu0 0
    %751 = vmatpush.bf16.msra.mxu0 0
    %752 = vmatpush.bf16.msra.mxu0 0
    %753 = vmatpush.bf16.msra.mxu0 0
    %754 = vmatpush.bf16.msra.mxu0 0
    %755 = vmatpush.bf16.msra.mxu0 %v743
    %756 = vmatmul.bf16.gmra.mxu0 %v740
    %v757 = vpop.f32.mrf.mxu0
    %v758 = vadd.f32 0.0, %v757
    %v759 = vpop.f32.mrf.mxu0
    %760 = vdwg.mxu0
    %761 = vmatpush.bf16.msra.mxu0 0
    %762 = vmatpush.bf16.msra.mxu0 0
    %763 = vmatpush.bf16.msra.mxu0 0
    %764 = vmatpush.bf16.msra.mxu0 0
    %765 = vmatpush.bf16.msra.mxu0 0
    %766 = vmatpush.bf16.msra.mxu0 0
    %767 = vmatpush.bf16.msra.mxu0 0
    %768 = vmatpush.bf16.msra.mxu0 %v746
    %769 = vmatmul.bf16.gmra.mxu0 %v740
    %v770 = vpop.f32.mrf.mxu0
    %v771 = vadd.f32 0.0, %v770
    %v772 = vpop.f32.mrf.mxu0
    %773 = vdwg.mxu0
    %v774 = vadd.f32 %v719, %v758
    %v775 = vadd.f32 %v720, %v771
    %v776 = vld [vmem:[%s489] sm:$0x3f]
    %v777 = vld [vmem:[%s311] sm:$0xf]
    %779 = vst [vmem:[#allocation1] ss:$4 sm:$0xff] %v776
    %v780 = vld.sshfl [vmem:[#allocation1] sm:$0xff pattern:$0x73625140]
    %v782 = vld.sshfl [vmem:[#allocation1 + $0x8] sm:$0xff pattern:$0x73625140]
    %v784 = vld.sshfl [vmem:[#allocation1 + $0x10] sm:$0xff pattern:$0x73625140]
    %786 = vrot.lane.b32.xlu0 %v780, 96
    %v787 = vpop.permute.xlu0 %786
    %788 = vrot.lane.b32.xlu0 %v782, 96
    %v789 = vpop.permute.xlu0 %788
    %790 = vrot.lane.b32.xlu0 %v784, 96
    %v791 = vpop.permute.xlu0 %790
    %v792 = vsel %vm327, %v787, %v789
    %v793 = vsel %vm327, %v789, %v791
    %v795 = vsel %vm26, %v777, 0
    %v798 = vsel %vm30, %v792, 0
    %v801 = vsel %vm30, %v793, 0
    %803 = vmatpush.bf16.msra.mxu0 0
    %804 = vmatpush.bf16.msra.mxu0 0
    %805 = vmatpush.bf16.msra.mxu0 0
    %806 = vmatpush.bf16.msra.mxu0 0
    %807 = vmatpush.bf16.msra.mxu0 0
    %808 = vmatpush.bf16.msra.mxu0 0
    %809 = vmatpush.bf16.msra.mxu0 0
    %810 = vmatpush.bf16.msra.mxu0 %v798
    %811 = vmatmul.bf16.gmra.mxu0 %v795
    %v812 = vpop.f32.mrf.mxu0
    %v813 = vadd.f32 0.0, %v812
    %v814 = vpop.f32.mrf.mxu0
    %815 = vdwg.mxu0
    %816 = vmatpush.bf16.msra.mxu0 0
    %817 = vmatpush.bf16.msra.mxu0 0
    %818 = vmatpush.bf16.msra.mxu0 0
    %819 = vmatpush.bf16.msra.mxu0 0
    %820 = vmatpush.bf16.msra.mxu0 0
    %821 = vmatpush.bf16.msra.mxu0 0
    %822 = vmatpush.bf16.msra.mxu0 0
    %823 = vmatpush.bf16.msra.mxu0 %v801
    %824 = vmatmul.bf16.gmra.mxu0 %v795
    %v825 = vpop.f32.mrf.mxu0
    %v826 = vadd.f32 0.0, %v825
    %v827 = vpop.f32.mrf.mxu0
    %828 = vdwg.mxu0
    %v829 = vadd.f32 %v774, %v813
    %v830 = vadd.f32 %v775, %v826
    %v831 = vld [vmem:[%s492] sm:$0x3f]
    %v832 = vld [vmem:[%s368] sm:$0xf]
    %834 = vst [vmem:[#allocation1] ss:$4 sm:$0xff] %v831
    %v835 = vld.sshfl [vmem:[#allocation1] sm:$0xff pattern:$0x73625140]
    %v837 = vld.sshfl [vmem:[#allocation1 + $0x8] sm:$0xff pattern:$0x73625140]
    %v839 = vld.sshfl [vmem:[#allocation1 + $0x10] sm:$0xff pattern:$0x73625140]
    %841 = vrot.lane.b32.xlu0 %v835, 96
    %v842 = vpop.permute.xlu0 %841
    %843 = vrot.lane.b32.xlu0 %v837, 96
    %v844 = vpop.permute.xlu0 %843
    %845 = vrot.lane.b32.xlu0 %v839, 96
    %v846 = vpop.permute.xlu0 %845
    %v847 = vsel %vm327, %v842, %v844
    %v848 = vsel %vm327, %v844, %v846
    %v850 = vsel %vm26, %v832, 0
    %v853 = vsel %vm30, %v847, 0
    %v856 = vsel %vm30, %v848, 0
    %858 = vmatpush.bf16.msra.mxu0 0
    %859 = vmatpush.bf16.msra.mxu0 0
    %860 = vmatpush.bf16.msra.mxu0 0
    %861 = vmatpush.bf16.msra.mxu0 0
    %862 = vmatpush.bf16.msra.mxu0 0
    %863 = vmatpush.bf16.msra.mxu0 0
    %864 = vmatpush.bf16.msra.mxu0 0
    %865 = vmatpush.bf16.msra.mxu0 %v853
    %866 = vmatmul.bf16.gmra.mxu0 %v850
    %v867 = vpop.f32.mrf.mxu0
    %v868 = vadd.f32 0.0, %v867
    %v869 = vpop.f32.mrf.mxu0
    %870 = vdwg.mxu0
    %871 = vmatpush.bf16.msra.mxu0 0
    %872 = vmatpush.bf16.msra.mxu0 0
    %873 = vmatpush.bf16.msra.mxu0 0
    %874 = vmatpush.bf16.msra.mxu0 0
    %875 = vmatpush.bf16.msra.mxu0 0
    %876 = vmatpush.bf16.msra.mxu0 0
    %877 = vmatpush.bf16.msra.mxu0 0
    %878 = vmatpush.bf16.msra.mxu0 %v856
    %879 = vmatmul.bf16.gmra.mxu0 %v850
    %v880 = vpop.f32.mrf.mxu0
    %v881 = vadd.f32 0.0, %v880
    %v882 = vpop.f32.mrf.mxu0
    %883 = vdwg.mxu0
    %v884 = vadd.f32 %v829, %v868
    %v885 = vadd.f32 %v830, %v881
    %v886 = vld [vmem:[%s569] sm:$0x3f]
    %v887 = vld [vmem:[%s424] sm:$0xf]
    %889 = vst [vmem:[#allocation1] ss:$4 sm:$0xff] %v886
    %v890 = vld.sshfl [vmem:[#allocation1] sm:$0xff pattern:$0x73625140]
    %v892 = vld.sshfl [vmem:[#allocation1 + $0x8] sm:$0xff pattern:$0x73625140]
    %v894 = vld.sshfl [vmem:[#allocation1 + $0x10] sm:$0xff pattern:$0x73625140]
    %896 = vrot.lane.b32.xlu0 %v890, 96
    %v897 = vpop.permute.xlu0 %896
    %898 = vrot.lane.b32.xlu0 %v892, 96
    %v899 = vpop.permute.xlu0 %898
    %900 = vrot.lane.b32.xlu0 %v894, 96
    %v901 = vpop.permute.xlu0 %900
    %v902 = vsel %vm327, %v897, %v899
    %v903 = vsel %vm327, %v899, %v901
    %v905 = vsel %vm26, %v887, 0
    %v908 = vsel %vm30, %v902, 0
    %v911 = vsel %vm30, %v903, 0
    %913 = vmatpush.bf16.msra.mxu0 0
    %914 = vmatpush.bf16.msra.mxu0 0
    %915 = vmatpush.bf16.msra.mxu0 0
    %916 = vmatpush.bf16.msra.mxu0 0
    %917 = vmatpush.bf16.msra.mxu0 0
    %918 = vmatpush.bf16.msra.mxu0 0
    %919 = vmatpush.bf16.msra.mxu0 0
    %920 = vmatpush.bf16.msra.mxu0 %v908
    %921 = vmatmul.bf16.gmra.mxu0 %v905
    %v922 = vpop.f32.mrf.mxu0
    %v923 = vadd.f32 0.0, %v922
    %v924 = vpop.f32.mrf.mxu0
    %925 = vdwg.mxu0
    %926 = vmatpush.bf16.msra.mxu0 0
    %927 = vmatpush.bf16.msra.mxu0 0
    %928 = vmatpush.bf16.msra.mxu0 0
    %929 = vmatpush.bf16.msra.mxu0 0
    %930 = vmatpush.bf16.msra.mxu0 0
    %931 = vmatpush.bf16.msra.mxu0 0
    %932 = vmatpush.bf16.msra.mxu0 0
    %933 = vmatpush.bf16.msra.mxu0 %v911
    %934 = vmatmul.bf16.gmra.mxu0 %v905
    %v935 = vpop.f32.mrf.mxu0
    %v936 = vadd.f32 0.0, %v935
    %v937 = vpop.f32.mrf.mxu0
    %938 = vdwg.mxu0
    %v939 = vadd.f32 %v884, %v923
    %v940 = vadd.f32 %v885, %v936
    %v941 = vld [vmem:[%s2] sm:$0xff]
    %943 = vset.pattern.permute.xlu0 0
    %944 = vperm.xlu0 %943, %v941
    %v945 = vpop.permute.xlu0 %944
    %v947 = vadd.f32 %v939, %v945
    %v948 = vadd.f32 %v940, %v945
    %s949 = scalar_lea.vmem [#allocation2], 16
    %950 = vst [vmem:[%s949] sm:$0xff] %v947
    %951 = vst [vmem:[%s949 + $0x8] sm:$0xff] %v948
    // Predicated region
    $region14: #{tpu_custom_call.1} parent=1 // pred_check
      _
    $region15: #{tpu_custom_call.1} parent=1 // pred_check_branch
      %953 = sbr.rel (0) target = $region17
    $region16: #{tpu_custom_call.1} parent=1 // pred_region
      %955 = vsyncadd [#allocation3], 0
      %s956 = sshll.u32 [#allocation2], 4
      %s957 = int_to_ptr.vmem [resolvable:$true] %s956
      %s958 = sshll.u32 %s3, 4
      %s959 = int_to_ptr.hbm [resolvable:$true] %s958
      %964 = dma.vmem_to_hbm [thread:$0]  %s957, 512, %s959, [#allocation3], 256, 256, 16
    $region17: #{tpu_custom_call.1} parent=1 // pred_fallthru
      _
    // Predicated region
    $region18: #{tpu_custom_call.1} parent=1 // pred_check
      _
    $region19: #{tpu_custom_call.1} parent=1 // pred_check_branch
      %966 = sbr.rel (0) target = $region21
    $region20: #{tpu_custom_call.1} parent=1 // pred_region
      %968 = dma.done [#allocation3], 512
    $region21: #{tpu_custom_call.1} parent=1 // pred_fallthru
      _
    %969 = vsyncpa [#allocation3], 1

</llo_original>
